<compile_context>
chip_gen: v7x
topology: tpu7x:2x2x1
jax: 0.10.0
libtpu: 0.0.40
codegen_flags: <defaults>
</compile_context>

<pallas_src>
import functools
import math

import jax
import jax.numpy as jnp
from jax import lax
from jax.experimental import pallas as pl
from jax.experimental.pallas import tpu as pltpu


def _round_up(a, b):
    return (a + b - 1) // b * b


# ---------------------------------------------------------------------------
# Kernel 1 (long sequences): fused QKV projection, one wide MXU matmul.
# x and w arrive already in mxu_dtype; outputs are stored in mxu_dtype.
# ---------------------------------------------------------------------------
def _qkv_proj_kernel(x_ref, w_ref, q_ref, k_ref, v_ref, *, dp, scale, ones_col):
    xw = jnp.dot(x_ref[...], w_ref[...], preferred_element_type=jnp.float32)
    # Fold the 1/sqrt(d_out) softmax scale into q once here (not into scores).
    q_ref[...] = (xw[:, :dp] * scale).astype(q_ref.dtype)
    k_ref[...] = xw[:, dp:2 * dp].astype(k_ref.dtype)
    vv = xw[:, 2 * dp:3 * dp]
    if ones_col is not None:
        # Write 1.0 into a padded lane of v: the PV matmul in the flash loop
        # then produces the softmax row-sum in that lane for free (removes a
        # per-step cross-lane sum reduce / XLU push).
        lane = lax.broadcasted_iota(jnp.int32, vv.shape, 1)
        vv = jnp.where(lane == ones_col, 1.0, vv)
    v_ref[...] = vv.astype(v_ref.dtype)


# ---------------------------------------------------------------------------
# Kernel 2 (long sequences): flash attention with online softmax (f32 math).
# ---------------------------------------------------------------------------
def _flash_attn_kernel(q_ref, k_ref, v_ref, bias_ref, o_ref,
                       m_sc, l_sc, acc_sc, *, ones_col, mxu_dtype, approx_recip):
    j = pl.program_id(1)

    @pl.when(j == 0)
    def _init():
        m_sc[...] = jnp.full_like(m_sc, -1e30)
        l_sc[...] = jnp.zeros_like(l_sc)
        acc_sc[...] = jnp.zeros_like(acc_sc)

    # scores = q @ k.T via a transposed contraction (no k.T copy); scale is
    # already folded into q at projection time.
    s = lax.dot_general(q_ref[...], k_ref[...],
                        dimension_numbers=(((1,), (1,)), ((), ())),
                        preferred_element_type=jnp.float32)
    s = s + bias_ref[...]                     # additive padding mask (0 / -1e30)

    m_prev = m_sc[...]
    m_new = jnp.maximum(m_prev, jnp.max(s, axis=-1, keepdims=True))
    alpha = jnp.exp(m_prev - m_new)
    p = jnp.exp(s - m_new)                    # f32 softmax math
    if ones_col is None:                      # fallback when no spare lane
        l_sc[...] = alpha * l_sc[...] + jnp.sum(p, axis=-1, keepdims=True)
    acc_sc[...] = alpha * acc_sc[...] + jnp.dot(
        p.astype(mxu_dtype), v_ref[...], preferred_element_type=jnp.float32)
    m_sc[...] = m_new

    @pl.when(j == pl.num_programs(1) - 1)
    def _finalize():
        acc = acc_sc[...]
        if ones_col is not None:
            lane = lax.broadcasted_iota(jnp.int32, acc.shape, 1)
            l = jnp.sum(jnp.where(lane == ones_col, acc, 0.0),
                        axis=-1, keepdims=True)
        else:
            l = l_sc[...]
        inv_l = pl.reciprocal(l, approx=approx_recip)
        o_ref[...] = (acc * inv_l).astype(o_ref.dtype)


# ---------------------------------------------------------------------------
# Kernel 3 (short sequences): fully fused projection + attention, one launch.
# ---------------------------------------------------------------------------
def _fused_attn_kernel(x_ref, w_ref, bias_ref, o_ref, *,
                       dp, scale, mxu_dtype, approx_recip):
    xw = jnp.dot(x_ref[...], w_ref[...], preferred_element_type=jnp.float32)
    q = (xw[:, :dp] * scale).astype(mxu_dtype)
    k = xw[:, dp:2 * dp].astype(mxu_dtype)
    v = xw[:, 2 * dp:3 * dp].astype(mxu_dtype)
    s = lax.dot_general(q, k, dimension_numbers=(((1,), (1,)), ((), ())),
                        preferred_element_type=jnp.float32)
    s = s + bias_ref[...]
    m = jnp.max(s, axis=-1, keepdims=True)
    p = jnp.exp(s - m)
    l = jnp.sum(p, axis=-1, keepdims=True)
    acc = jnp.dot(p.astype(mxu_dtype), v, preferred_element_type=jnp.float32)
    inv_l = pl.reciprocal(l, approx=approx_recip)
    o_ref[...] = (acc * inv_l).astype(o_ref.dtype)


# ---------------------------------------------------------------------------
# Wrapper.
# ---------------------------------------------------------------------------
def self_attention_v1(x, w_query, w_key, w_value, *, mxu_dtype=jnp.bfloat16):
    seq, d_in = x.shape
    d_out = w_query.shape[1]
    out_dtype = x.dtype
    scale = 1.0 / math.sqrt(d_out)            # keys.shape[-1] ** 0.5 (real d_out)

    dp = _round_up(d_out, 128)                # lane-dense head dim
    d_in_p = _round_up(d_in, 128)             # lane-dense contraction dim
    approx_recip = (mxu_dtype != jnp.float32)
    # Spare padded lane used to fold the softmax row-sum into the PV matmul.
    ones_col = d_out if d_out < dp else None

    def _pad_w(w):
        return jnp.zeros((d_in_p, dp), jnp.float32).at[:d_in, :d_out].set(
            w.astype(jnp.float32))

    # Pad + concatenate + cast the weight wrapper-side: it is re-read by every
    # projection grid step, so pre-casting halves its HBM/VMEM footprint.
    wqkv = jnp.concatenate(
        [_pad_w(w_query), _pad_w(w_key), _pad_w(w_value)], axis=1
    ).astype(mxu_dtype)                       # (d_in_p, 3*dp)

    s8 = _round_up(seq, 8)

    # ---------------- fused single-kernel path (short sequences) -----------
    if s8 <= 512:
        sp = s8
        x_p = jnp.zeros((sp, d_in_p), mxu_dtype).at[:seq, :d_in].set(
            x.astype(mxu_dtype))
        bias = jnp.where(jnp.arange(sp, dtype=jnp.int32) < seq,
                         0.0, -1e30).astype(jnp.float32)[None, :]
        fused = functools.partial(_fused_attn_kernel, dp=dp, scale=scale,
                                  mxu_dtype=mxu_dtype, approx_recip=approx_recip)
        out_p = pl.pallas_call(
            fused,
            out_shape=jax.ShapeDtypeStruct((sp, dp), out_dtype),
            grid=(1,),
            in_specs=[
                pl.BlockSpec((sp, d_in_p), lambda i: (0, 0)),
                pl.BlockSpec((d_in_p, 3 * dp), lambda i: (0, 0)),
                pl.BlockSpec((1, sp), lambda i: (0, 0)),
            ],
            out_specs=pl.BlockSpec((sp, dp), lambda i: (0, 0)),
            compiler_params=pltpu.CompilerParams(
                dimension_semantics=("arbitrary",),
                vmem_limit_bytes=64 * 1024 * 1024),
        )(x_p, wqkv, bias)
        return out_p[:seq, :d_out]

    # ---------------- flash path (long sequences) ---------------------------
    bq = bkv = 512                            # seq > 512 => sp >= 1024 => >=2 q blocks
    sp = _round_up(seq, bkv)
    x_p = jnp.zeros((sp, d_in_p), mxu_dtype).at[:seq, :d_in].set(
        x.astype(mxu_dtype))
    bias = jnp.where(jnp.arange(sp, dtype=jnp.int32) < seq,
                     0.0, -1e30).astype(jnp.float32)[None, :]

    proj = functools.partial(_qkv_proj_kernel, dp=dp, scale=scale,
                             ones_col=ones_col)
    q, k, v = pl.pallas_call(
        proj,
        out_shape=(jax.ShapeDtypeStruct((sp, dp), mxu_dtype),
                   jax.ShapeDtypeStruct((sp, dp), mxu_dtype),
                   jax.ShapeDtypeStruct((sp, dp), mxu_dtype)),
        grid=(sp // bq,),
        in_specs=[
            pl.BlockSpec((bq, d_in_p), lambda i: (i, 0)),
            # TODO(synk): for very large d_in*d_out, tile the 3*dp axis (or use
            # pipeline_mode=pl.Buffered(1)) so the VMEM-resident weight stays
            # inside v7x's 64 MiB.
            pl.BlockSpec((d_in_p, 3 * dp), lambda i: (0, 0)),
        ],
        out_specs=(pl.BlockSpec((bq, dp), lambda i: (i, 0)),
                   pl.BlockSpec((bq, dp), lambda i: (i, 0)),
                   pl.BlockSpec((bq, dp), lambda i: (i, 0))),
        compiler_params=pltpu.CompilerParams(
            dimension_semantics=("parallel",),
            vmem_limit_bytes=64 * 1024 * 1024),
    )(x_p, wqkv)

    flash = functools.partial(_flash_attn_kernel, ones_col=ones_col,
                              mxu_dtype=mxu_dtype, approx_recip=approx_recip)
    out_p = pl.pallas_call(
        flash,
        out_shape=jax.ShapeDtypeStruct((sp, dp), out_dtype),
        grid=(sp // bq, sp // bkv),
        in_specs=[
            pl.BlockSpec((bq, dp), lambda i, j: (i, 0)),
            pl.BlockSpec((bkv, dp), lambda i, j: (j, 0)),
            pl.BlockSpec((bkv, dp), lambda i, j: (j, 0)),
            pl.BlockSpec((1, bkv), lambda i, j: (0, j)),
        ],
        out_specs=pl.BlockSpec((bq, dp), lambda i, j: (i, 0)),
        scratch_shapes=[
            pltpu.VMEM((bq, 1), jnp.float32),    # running max
            pltpu.VMEM((bq, 1), jnp.float32),    # running denom (fallback only)
            pltpu.VMEM((bq, dp), jnp.float32),   # running context accumulator
        ],
        compiler_params=pltpu.CompilerParams(
            dimension_semantics=("parallel", "arbitrary"),
            vmem_limit_bytes=64 * 1024 * 1024),
    )(q, k, v, bias)

    # TODO(synk): for many heads / batch items, pack two heads along lanes
    # (dp -> 256, fills v6e/v7x's 256-wide MXU) or add a leading batch grid
    # axis instead of one pallas_call per problem.
    return out_p[:seq, :d_out]


# ---------------------------------------------------------------------------
# References.
# ---------------------------------------------------------------------------
def self_attention_v1_ref(x, w_query, w_key, w_value):
    # Literal transcription of the PyTorch module's forward (f32).
    keys = x @ w_key
    queries = x @ w_query
    values = x @ w_value
    attn_scores = queries @ keys.T
    attn_weights = jax.nn.softmax(attn_scores / keys.shape[-1] ** 0.5, axis=-1)
    return attn_weights @ values


def _mixed_precision_ref(x, w_query, w_key, w_value, mxu_dtype):
    # Same math as the kernels: low-precision MXU inputs, f32 accumulation,
    # f32 softmax.  Used to tightly bound the bf16 path.
    scale = 1.0 / math.sqrt(w_query.shape[1])
    mm = lambda a, b: jnp.dot(a.astype(mxu_dtype), b.astype(mxu_dtype),
                              preferred_element_type=jnp.float32)
    q = mm(x, w_query) * scale
    k = mm(x, w_key)
    v = mm(x, w_value)
    s = mm(q, k.T)
    p = jnp.exp(s - jnp.max(s, axis=-1, keepdims=True))
    w = p / jnp.sum(p, axis=-1, keepdims=True)
    return mm(w, v).astype(x.dtype)


if __name__ == "__main__":
    def _check(seq, d_in, d_out, mixed_tol):
        key = jax.random.PRNGKey(0)
        kx, kq, kk, kv = jax.random.split(key, 4)
        # Deterministic "torch.rand"-style init: uniform [0, 1).
        x = jax.random.uniform(kx, (seq, d_in), dtype=jnp.float32)
        w_query = jax.random.uniform(kq, (d_in, d_out), dtype=jnp.float32)
        w_key = jax.random.uniform(kk, (d_in, d_out), dtype=jnp.float32)
        w_value = jax.random.uniform(kv, (d_in, d_out), dtype=jnp.float32)

        ref_f32 = self_attention_v1_ref(x, w_query, w_key, w_value)

        # 1) f32-MXU mode: must match the module's forward tightly.
        out_f32 = jax.block_until_ready(
            self_attention_v1(x, w_query, w_key, w_value, mxu_dtype=jnp.float32))
        assert out_f32.shape == (seq, d_out)
        assert jnp.allclose(out_f32, ref_f32, atol=1e-3, rtol=1e-3)

        # 2) Default bf16-MXU mode (f32 accumulation + f32 softmax): matches a
        #    reference using the same mixed precision, and stays close to f32.
        out_bf16 = jax.block_until_ready(
            self_attention_v1(x, w_query, w_key, w_value))
        ref_mixed = _mixed_precision_ref(x, w_query, w_key, w_value, jnp.bfloat16)
        assert out_bf16.shape == (seq, d_out)
        assert jnp.allclose(out_bf16, ref_mixed, atol=mixed_tol, rtol=mixed_tol)
        assert jnp.allclose(out_bf16, ref_f32, atol=1e-1, rtol=1e-1)

    _check(seq=8, d_in=32, d_out=32, mixed_tol=2e-2)    # fused single-kernel path
    _check(seq=640, d_in=64, d_out=32, mixed_tol=5e-2)  # flash path (grid 2x2, padded kv)
    print("KERNEL_OK")
</pallas_src>

<mosaic_0001>
module attributes {stable_mosaic.version = 11 : i64} {
  func.func @_fused_attn_kernel(%arg0: i32, %arg1: memref<8x128xf32, #tpu.memory_space<vmem>>, %arg2: memref<128x384xf32, #tpu.memory_space<vmem>>, %arg3: memref<1x8xf32, #tpu.memory_space<vmem>>, %arg4: memref<8x128xf32, #tpu.memory_space<vmem>>) attributes {dimension_semantics = [#tpu.dimension_semantics<arbitrary>], iteration_bounds = array<i64: 1>, scalar_prefetch = 0 : i64, scratch_operands = 0 : i64, tpu.core_type = #tpu.core_type<tc>, window_params = [{pipeline_mode = #tpu.pipeline_mode<synchronous>, transform_indices = @transform_0, window_bounds = array<i64: 8, 128>}, {pipeline_mode = #tpu.pipeline_mode<synchronous>, transform_indices = @transform_1, window_bounds = array<i64: 128, 384>}, {pipeline_mode = #tpu.pipeline_mode<synchronous>, transform_indices = @transform_2, window_bounds = array<i64: 1, 8>}, {pipeline_mode = #tpu.pipeline_mode<synchronous>, transform_indices = @transform_3, window_bounds = array<i64: 8, 128>}]} {
    %c0 = arith.constant 0 : index
    %c0_0 = arith.constant 0 : index
    %0 = vector.load %arg1[%c0, %c0_0] : memref<8x128xf32, #tpu.memory_space<vmem>>, vector<8x128xf32>
    %c0_1 = arith.constant 0 : index
    %c0_2 = arith.constant 0 : index
    %1 = vector.load %arg2[%c0_1, %c0_2] : memref<128x384xf32, #tpu.memory_space<vmem>>, vector<128x384xf32>
    %cst = arith.constant dense<0.000000e+00> : vector<8x384xf32>
    %2 = tpu.matmul %0, %1, %cst {dimension_numbers = #tpu.dot_dimension_numbers<[1], [0], [0], [1], [0, 0, 1, 1], [], []>} : vector<8x128xf32>, vector<128x384xf32>, vector<8x384xf32> -> vector<8x384xf32>
    %3 = vector.extract_strided_slice %2 {offsets = [0, 0], sizes = [8, 128], strides = [1, 1]} : vector<8x384xf32> to vector<8x128xf32>
    %cst_3 = arith.constant 0.176776692 : f32
    %4 = vector.broadcast %cst_3 : f32 to vector<8x128xf32>
    %5 = arith.mulf %3, %4 : vector<8x128xf32>
    %6 = vector.extract_strided_slice %2 {offsets = [0, 128], sizes = [8, 128], strides = [1, 1]} : vector<8x384xf32> to vector<8x128xf32>
    %7 = vector.extract_strided_slice %2 {offsets = [0, 256], sizes = [8, 128], strides = [1, 1]} : vector<8x384xf32> to vector<8x128xf32>
    %cst_4 = arith.constant dense<0.000000e+00> : vector<8x8xf32>
    %8 = tpu.matmul %5, %6, %cst_4 {dimension_numbers = #tpu.dot_dimension_numbers<[1], [1], [0], [0], [0, 0, 1, 0], [], []>} : vector<8x128xf32>, vector<8x128xf32>, vector<8x8xf32> -> vector<8x8xf32>
    %c0_5 = arith.constant 0 : index
    %c0_6 = arith.constant 0 : index
    %9 = vector.load %arg3[%c0_5, %c0_6] : memref<1x8xf32, #tpu.memory_space<vmem>>, vector<1x8xf32>
    %10 = vector.broadcast %9 : vector<1x8xf32> to vector<8x8xf32>
    %11 = arith.addf %8, %10 : vector<8x8xf32>
    %cst_7 = arith.constant dense<0xFF800000> : vector<8xf32>
    %12 = vector.multi_reduction <maximumf>, %11, %cst_7 [1] : vector<8x8xf32> to vector<8xf32>
    %13 = vector.shape_cast %12 : vector<8xf32> to vector<8x1xf32>
    %14 = vector.broadcast %13 : vector<8x1xf32> to vector<8x8xf32>
    %15 = arith.subf %11, %14 : vector<8x8xf32>
    %16 = math.exp %15 : vector<8x8xf32>
    %cst_8 = arith.constant dense<0.000000e+00> : vector<8xf32>
    %17 = vector.multi_reduction <add>, %16, %cst_8 [1] : vector<8x8xf32> to vector<8xf32>
    %18 = vector.shape_cast %17 : vector<8xf32> to vector<8x1xf32>
    %cst_9 = arith.constant dense<0.000000e+00> : vector<8x128xf32>
    %19 = tpu.matmul %16, %7, %cst_9 {dimension_numbers = #tpu.dot_dimension_numbers<[1], [0], [0], [1], [0, 0, 1, 1], [], []>} : vector<8x8xf32>, vector<8x128xf32>, vector<8x128xf32> -> vector<8x128xf32>
    %20 = tpu.reciprocal %18 : vector<8x1xf32> -> vector<8x1xf32>
    %21 = vector.broadcast %20 : vector<8x1xf32> to vector<8x128xf32>
    %22 = arith.mulf %19, %21 : vector<8x128xf32>
    %c0_10 = arith.constant 0 : index
    %c0_11 = arith.constant 0 : index
    %23 = vector.load %arg4[%c0_10, %c0_11] : memref<8x128xf32, #tpu.memory_space<vmem>>, vector<8x128xf32>
    tpu.vector_store %arg4[%c0_10, %c0_11], %22 {strides = array<i32>} : memref<8x128xf32, #tpu.memory_space<vmem>>, vector<8x128xf32>,
    return
  }
  func.func @transform_0(%arg0: i32) -> (i32, i32) {
    %c0_i32 = arith.constant 0 : i32
    %c0_i32_0 = arith.constant 0 : i32
    %c0_i32_1 = arith.constant 0 : i32
    return %c0_i32, %c0_i32_0 : i32, i32
  }
  func.func @transform_1(%arg0: i32) -> (i32, i32) {
    %c0_i32 = arith.constant 0 : i32
    %c0_i32_0 = arith.constant 0 : i32
    %c0_i32_1 = arith.constant 0 : i32
    return %c0_i32, %c0_i32_0 : i32, i32
  }
  func.func @transform_2(%arg0: i32) -> (i32, i32) {
    %c0_i32 = arith.constant 0 : i32
    %c0_i32_0 = arith.constant 0 : i32
    %c0_i32_1 = arith.constant 0 : i32
    return %c0_i32, %c0_i32_0 : i32, i32
  }
  func.func @transform_3(%arg0: i32) -> (i32, i32) {
    %c0_i32 = arith.constant 0 : i32
    %c0_i32_0 = arith.constant 0 : i32
    %c0_i32_1 = arith.constant 0 : i32
    return %c0_i32, %c0_i32_0 : i32, i32
  }
}

</mosaic_0001>

<llo_original>
// kernel: tpu_custom_call.1
$region0: #{tpu_custom_call.1}
  #allocation0 [shape = 'u32[]', space=smem, size = 0x4, offset = 0x4, fixed_abs, tag = 'smem constant byte address 0x4 - core index']
  #allocation1 [shape = 'u32[144,128]{1,0:T(1,128)}', space=vmem, size = 0x12000, scoped, tag = 'internal scratch']
  %s0 = inlined_call_operand.hbm [shape: f32[8,128], index: 0, kind: input, shape index: {}]
  %s1 = inlined_call_operand.hbm [shape: f32[128,384], index: 1, kind: input, shape index: {}]
  %s2 = inlined_call_operand.hbm [shape: f32[1,8], index: 2, kind: input, shape index: {}]
  %s3 = inlined_call_operand.hbm [shape: f32[8,128], index: 3, kind: output, shape index: {}]
  %s4 = sld [smem:[#allocation0]]
  $region34: #{tpu_custom_call.1} parent=0
    _
  %s6 = ssub.s32 1, %s4
  %s7 = scalar_select 0, %s6, %s4
  $region1: #{tpu_custom_call.1} parent=0
    #allocation2 [shape = 'u8[4096]{0}', space=vmem, size = 0x1000, scoped, tag = 'input window, operand 0, single buffered']
    #allocation3 [shape = 's32[1]{0}', space=sflag, size = 0x4, scoped, tag = 'scoped memory for tpu_custom_call.1']
    #allocation4 [shape = 's32[1]{0}', space=sflag, size = 0x4, scoped, tag = 'scoped memory for tpu_custom_call.1']
    #allocation5 [shape = 'u8[196608]{0}', space=vmem, size = 0x30000, scoped, tag = 'input window, operand 1, single buffered']
    #allocation6 [shape = 's32[1]{0}', space=sflag, size = 0x4, scoped, tag = 'scoped memory for tpu_custom_call.1']
    #allocation7 [shape = 'u8[512]{0}', space=vmem, size = 0x400, scoped, tag = 'input window, operand 2, single buffered']
    #allocation8 [shape = 'u8[4096]{0}', space=vmem, size = 0x1000, scoped, tag = 'output window, operand 0, single buffered']
    %8 = vsyncpa [#allocation3], 0
    %9 = vsyncpa [#allocation6], 0
    %10 = vsyncpa [#allocation4], 0
    // Predicated region
    $region2: #{tpu_custom_call.1} parent=1 // pred_check
      _
    $region3: #{tpu_custom_call.1} parent=1 // pred_check_branch
      %12 = sbr.rel (0) target = $region5
    $region4: #{tpu_custom_call.1} parent=1 // pred_region
      %s14 = ssub.s32 128, 128
      %15 = vsyncadd [#allocation3], %s14
      %s17 = sshll.u32 [#allocation2], 4
      %s18 = int_to_ptr.vmem [resolvable:$true] %s17
      %20 = dma.hbm_to_vmem [thread:$0]  %s0, 128, %s18, [#allocation3]
    $region5: #{tpu_custom_call.1} parent=1 // pred_fallthru
      _
    // Predicated region
    $region6: #{tpu_custom_call.1} parent=1 // pred_check
      _
    $region7: #{tpu_custom_call.1} parent=1 // pred_check_branch
      %22 = sbr.rel (0) target = $region9
    $region8: #{tpu_custom_call.1} parent=1 // pred_region
      %s24 = ssub.s32 6144, 6144
      %25 = vsyncadd [#allocation6], %s24
      %s26 = sshll.u32 [#allocation5], 4
      %s27 = int_to_ptr.vmem [resolvable:$true] %s26
      %32 = dma.hbm_to_vmem [thread:$0]  %s1, 6144, %s27, [#allocation6], 384, 384, 24
    $region9: #{tpu_custom_call.1} parent=1 // pred_fallthru
      _
    // Predicated region
    $region10: #{tpu_custom_call.1} parent=1 // pred_check
      _
    $region11: #{tpu_custom_call.1} parent=1 // pred_check_branch
      %34 = sbr.rel (0) target = $region13
    $region12: #{tpu_custom_call.1} parent=1 // pred_region
      %s36 = ssub.s32 16, 16
      %37 = vsyncadd [#allocation6], %s36
      %s39 = sshll.u32 [#allocation7], 4
      %s40 = int_to_ptr.vmem [resolvable:$true] %s39
      %42 = dma.hbm_to_vmem [thread:$0]  %s2, 16, %s40, [#allocation6]
    $region13: #{tpu_custom_call.1} parent=1 // pred_fallthru
      _
    // Predicated region
    $region14: #{tpu_custom_call.1} parent=1 // pred_check
      _
    $region15: #{tpu_custom_call.1} parent=1 // pred_check_branch
      %44 = sbr.rel (0) target = $region17
    $region16: #{tpu_custom_call.1} parent=1 // pred_region
      %45 = dma.done [#allocation3], 128
    $region17: #{tpu_custom_call.1} parent=1 // pred_fallthru
      _
    // Predicated region
    $region18: #{tpu_custom_call.1} parent=1 // pred_check
      _
    $region19: #{tpu_custom_call.1} parent=1 // pred_check_branch
      %47 = sbr.rel (0) target = $region21
    $region20: #{tpu_custom_call.1} parent=1 // pred_region
      %48 = dma.done [#allocation6], 6144
    $region21: #{tpu_custom_call.1} parent=1 // pred_fallthru
      _
    // Predicated region
    $region22: #{tpu_custom_call.1} parent=1 // pred_check
      _
    $region23: #{tpu_custom_call.1} parent=1 // pred_check_branch
      %50 = sbr.rel (0) target = $region25
    $region24: #{tpu_custom_call.1} parent=1 // pred_region
      %51 = dma.done [#allocation6], 16
    $region25: #{tpu_custom_call.1} parent=1 // pred_fallthru
      _
    %v52 = vld [vmem:[#allocation2] sm:$0xff]
    %v53 = vld [vmem:[#allocation5] sm:$0xff]
    %v54 = vld [vmem:[#allocation5 + $0x8] sm:$0xff]
    %v55 = vld [vmem:[#allocation5 + $0x10] sm:$0xff]
    %v56 = vld [vmem:[#allocation5 + $0x18] sm:$0xff]
    %v57 = vld [vmem:[#allocation5 + $0x20] sm:$0xff]
    %v58 = vld [vmem:[#allocation5 + $0x28] sm:$0xff]
    %v59 = vld [vmem:[#allocation5 + $0x30] sm:$0xff]
    %v60 = vld [vmem:[#allocation5 + $0x38] sm:$0xff]
    %v61 = vld [vmem:[#allocation5 + $0x40] sm:$0xff]
    %v62 = vld [vmem:[#allocation5 + $0x48] sm:$0xff]
    %v63 = vld [vmem:[#allocation5 + $0x50] sm:$0xff]
    %v64 = vld [vmem:[#allocation5 + $0x58] sm:$0xff]
    %v65 = vld [vmem:[#allocation5 + $0x60] sm:$0xff]
    %v66 = vld [vmem:[#allocation5 + $0x68] sm:$0xff]
    %v67 = vld [vmem:[#allocation5 + $0x70] sm:$0xff]
    %v68 = vld [vmem:[#allocation5 + $0x78] sm:$0xff]
    %v69 = vld [vmem:[#allocation5 + $0x80] sm:$0xff]
    %v70 = vld [vmem:[#allocation5 + $0x88] sm:$0xff]
    %v71 = vld [vmem:[#allocation5 + $0x90] sm:$0xff]
    %v72 = vld [vmem:[#allocation5 + $0x98] sm:$0xff]
    %v73 = vld [vmem:[#allocation5 + $0xa0] sm:$0xff]
    %v74 = vld [vmem:[#allocation5 + $0xa8] sm:$0xff]
    %v75 = vld [vmem:[#allocation5 + $0xb0] sm:$0xff]
    %v76 = vld [vmem:[#allocation5 + $0xb8] sm:$0xff]
    %v77 = vld [vmem:[#allocation5 + $0xc0] sm:$0xff]
    %v78 = vld [vmem:[#allocation5 + $0xc8] sm:$0xff]
    %v79 = vld [vmem:[#allocation5 + $0xd0] sm:$0xff]
    %v80 = vld [vmem:[#allocation5 + $0xd8] sm:$0xff]
    %v81 = vld [vmem:[#allocation5 + $0xe0] sm:$0xff]
    %v82 = vld [vmem:[#allocation5 + $0xe8] sm:$0xff]
    %v83 = vld [vmem:[#allocation5 + $0xf0] sm:$0xff]
    %v84 = vld [vmem:[#allocation5 + $0xf8] sm:$0xff]
    %v85 = vld [vmem:[#allocation5 + $0x100] sm:$0xff]
    %v86 = vld [vmem:[#allocation5 + $0x108] sm:$0xff]
    %v87 = vld [vmem:[#allocation5 + $0x110] sm:$0xff]
    %v88 = vld [vmem:[#allocation5 + $0x118] sm:$0xff]
    %v89 = vld [vmem:[#allocation5 + $0x120] sm:$0xff]
    %v90 = vld [vmem:[#allocation5 + $0x128] sm:$0xff]
    %v91 = vld [vmem:[#allocation5 + $0x130] sm:$0xff]
    %v92 = vld [vmem:[#allocation5 + $0x138] sm:$0xff]
    %v93 = vld [vmem:[#allocation5 + $0x140] sm:$0xff]
    %v94 = vld [vmem:[#allocation5 + $0x148] sm:$0xff]
    %v95 = vld [vmem:[#allocation5 + $0x150] sm:$0xff]
    %v96 = vld [vmem:[#allocation5 + $0x158] sm:$0xff]
    %v97 = vld [vmem:[#allocation5 + $0x160] sm:$0xff]
    %v98 = vld [vmem:[#allocation5 + $0x168] sm:$0xff]
    %v99 = vld [vmem:[#allocation5 + $0x170] sm:$0xff]
    %v100 = vld [vmem:[#allocation5 + $0x178] sm:$0xff]
    %101 = vmatprep.subr.mxu0 %v54
    %102 = vmatpush1.msra.mxu0 %v53
    %103 = vmatprep.subr.mxu0 %v57
    %104 = vmatpush1.msra.mxu0 %v56
    %105 = vmatprep.subr.mxu0 %v60
    %106 = vmatpush1.msra.mxu0 %v59
    %107 = vmatprep.subr.mxu0 %v63
    %108 = vmatpush1.msra.mxu0 %v62
    %109 = vmatprep.subr.mxu0 %v66
    %110 = vmatpush1.msra.mxu0 %v65
    %111 = vmatprep.subr.mxu0 %v69
    %112 = vmatpush1.msra.mxu0 %v68
    %113 = vmatprep.subr.mxu0 %v72
    %114 = vmatpush1.msra.mxu0 %v71
    %115 = vmatprep.subr.mxu0 %v75
    %116 = vmatpush1.msra.mxu0 %v74
    %117 = vmatprep.subr.mxu0 %v78
    %118 = vmatpush1.msra.mxu0 %v77
    %119 = vmatprep.subr.mxu0 %v81
    %120 = vmatpush1.msra.mxu0 %v80
    %121 = vmatprep.subr.mxu0 %v84
    %122 = vmatpush1.msra.mxu0 %v83
    %123 = vmatprep.subr.mxu0 %v87
    %124 = vmatpush1.msra.mxu0 %v86
    %125 = vmatprep.subr.mxu0 %v90
    %126 = vmatpush1.msra.mxu0 %v89
    %127 = vmatprep.subr.mxu0 %v93
    %128 = vmatpush1.msra.mxu0 %v92
    %129 = vmatprep.subr.mxu0 %v96
    %130 = vmatpush1.msra.mxu0 %v95
    %131 = vmatprep.subr.mxu0 %v99
    %132 = vmatpush1.msra.mxu0 %v98
    %133 = vmatprep.subr.mxu0 0.0
    %134 = vmatpush1.msra.mxu0 0.0
    %135 = vmatprep.subr.mxu0 0.0
    %136 = vmatpush1.msra.mxu0 0.0
    %137 = vmatprep.subr.mxu0 0.0
    %138 = vmatpush1.msra.mxu0 0.0
    %139 = vmatprep.subr.mxu0 0.0
    %140 = vmatpush1.msra.mxu0 0.0
    %141 = vmatprep.subr.mxu0 0.0
    %142 = vmatpush1.msra.mxu0 0.0
    %143 = vmatprep.subr.mxu0 0.0
    %144 = vmatpush1.msra.mxu0 0.0
    %145 = vmatprep.subr.mxu0 0.0
    %146 = vmatpush1.msra.mxu0 0.0
    %147 = vmatprep.subr.mxu0 0.0
    %148 = vmatpush1.msra.mxu0 0.0
    %149 = vmatprep.subr.mxu0 0.0
    %150 = vmatpush1.msra.mxu0 0.0
    %151 = vmatprep.subr.mxu0 0.0
    %152 = vmatpush1.msra.mxu0 0.0
    %153 = vmatprep.subr.mxu0 0.0
    %154 = vmatpush1.msra.mxu0 0.0
    %155 = vmatprep.subr.mxu0 0.0
    %156 = vmatpush1.msra.mxu0 0.0
    %157 = vmatprep.subr.mxu0 0.0
    %158 = vmatpush1.msra.mxu0 0.0
    %159 = vmatprep.subr.mxu0 0.0
    %160 = vmatpush1.msra.mxu0 0.0
    %161 = vmatprep.subr.mxu0 0.0
    %162 = vmatpush1.msra.mxu0 0.0
    %163 = vmatprep.subr.mxu0 0.0
    %164 = vmatpush1.msra.mxu0 0.0
    %165 = vmatprep.mubr.f32.mxu0 0.0
    %166 = vmatmul.mubr.f32.gmra.mrb[0].mxu0 %v52
    %v167 = vpop.f32.mrb[0].mxu0
    %v168 = vadd.f32 0.0, %v167
    %v169 = vpop.f32.mrb[0].mxu0
    %v170 = vadd.f32 0.0, %v169
    %171 = vdwg.mxu0
    %172 = vmatprep.subr.mxu0 0.0
    %173 = vmatpush1.msra.mxu0 %v55
    %174 = vmatprep.subr.mxu0 0.0
    %175 = vmatpush1.msra.mxu0 %v58
    %176 = vmatprep.subr.mxu0 0.0
    %177 = vmatpush1.msra.mxu0 %v61
    %178 = vmatprep.subr.mxu0 0.0
    %179 = vmatpush1.msra.mxu0 %v64
    %180 = vmatprep.subr.mxu0 0.0
    %181 = vmatpush1.msra.mxu0 %v67
    %182 = vmatprep.subr.mxu0 0.0
    %183 = vmatpush1.msra.mxu0 %v70
    %184 = vmatprep.subr.mxu0 0.0
    %185 = vmatpush1.msra.mxu0 %v73
    %186 = vmatprep.subr.mxu0 0.0
    %187 = vmatpush1.msra.mxu0 %v76
    %188 = vmatprep.subr.mxu0 0.0
    %189 = vmatpush1.msra.mxu0 %v79
    %190 = vmatprep.subr.mxu0 0.0
    %191 = vmatpush1.msra.mxu0 %v82
    %192 = vmatprep.subr.mxu0 0.0
    %193 = vmatpush1.msra.mxu0 %v85
    %194 = vmatprep.subr.mxu0 0.0
    %195 = vmatpush1.msra.mxu0 %v88
    %196 = vmatprep.subr.mxu0 0.0
    %197 = vmatpush1.msra.mxu0 %v91
    %198 = vmatprep.subr.mxu0 0.0
    %199 = vmatpush1.msra.mxu0 %v94
    %200 = vmatprep.subr.mxu0 0.0
    %201 = vmatpush1.msra.mxu0 %v97
    %202 = vmatprep.subr.mxu0 0.0
    %203 = vmatpush1.msra.mxu0 %v100
    %204 = vmatprep.subr.mxu0 0.0
    %205 = vmatpush1.msra.mxu0 0.0
    %206 = vmatprep.subr.mxu0 0.0
    %207 = vmatpush1.msra.mxu0 0.0
    %208 = vmatprep.subr.mxu0 0.0
    %209 = vmatpush1.msra.mxu0 0.0
    %210 = vmatprep.subr.mxu0 0.0
    %211 = vmatpush1.msra.mxu0 0.0
    %212 = vmatprep.subr.mxu0 0.0
    %213 = vmatpush1.msra.mxu0 0.0
    %214 = vmatprep.subr.mxu0 0.0
    %215 = vmatpush1.msra.mxu0 0.0
    %216 = vmatprep.subr.mxu0 0.0
    %217 = vmatpush1.msra.mxu0 0.0
    %218 = vmatprep.subr.mxu0 0.0
    %219 = vmatpush1.msra.mxu0 0.0
    %220 = vmatprep.subr.mxu0 0.0
    %221 = vmatpush1.msra.mxu0 0.0
    %222 = vmatprep.subr.mxu0 0.0
    %223 = vmatpush1.msra.mxu0 0.0
    %224 = vmatprep.subr.mxu0 0.0
    %225 = vmatpush1.msra.mxu0 0.0
    %226 = vmatprep.subr.mxu0 0.0
    %227 = vmatpush1.msra.mxu0 0.0
    %228 = vmatprep.subr.mxu0 0.0
    %229 = vmatpush1.msra.mxu0 0.0
    %230 = vmatprep.subr.mxu0 0.0
    %231 = vmatpush1.msra.mxu0 0.0
    %232 = vmatprep.subr.mxu0 0.0
    %233 = vmatpush1.msra.mxu0 0.0
    %234 = vmatprep.subr.mxu0 0.0
    %235 = vmatpush1.msra.mxu0 0.0
    %236 = vmatprep.mubr.f32.mxu0 0.0
    %237 = vmatmul.mubr.f32.gmra.mrb[0].mxu0 %v52
    %v238 = vpop.f32.mrb[0].mxu0
    %v239 = vadd.f32 0.0, %v238
    %v240 = vpop.f32.mrb[0].mxu0
    %241 = vdwg.mxu0
    %v242 = vmul.f32 %v168, 0.17677669
    %v243 = vld [vmem:[#allocation7] sm:$0x1]
    %v245 = vlaneseq
    %v246 = vshrl.u32 %v245, 7
    %v247 = vsub.s32 0, %v246
    %v248 = vrot.slane %v243, %v247
    %250 = vmatprep.subr.mxu0 0.0
    %251 = vmatpush1.xpose.msra.mxu0 %v170
    %252 = vmatprep.subr.mxu0 0.0
    %253 = vmatpush1.xpose.msra.mxu0 0.0
    %254 = vmatprep.subr.mxu0 0.0
    %255 = vmatpush1.xpose.msra.mxu0 0.0
    %256 = vmatprep.subr.mxu0 0.0
    %257 = vmatpush1.xpose.msra.mxu0 0.0
    %258 = vmatprep.subr.mxu0 0.0
    %259 = vmatpush1.xpose.msra.mxu0 0.0
    %260 = vmatprep.subr.mxu0 0.0
    %261 = vmatpush1.xpose.msra.mxu0 0.0
    %262 = vmatprep.subr.mxu0 0.0
    %263 = vmatpush1.xpose.msra.mxu0 0.0
    %264 = vmatprep.subr.mxu0 0.0
    %265 = vmatpush1.xpose.msra.mxu0 0.0
    %266 = vmatprep.subr.mxu0 0.0
    %267 = vmatpush1.xpose.msra.mxu0 0.0
    %268 = vmatprep.subr.mxu0 0.0
    %269 = vmatpush1.xpose.msra.mxu0 0.0
    %270 = vmatprep.subr.mxu0 0.0
    %271 = vmatpush1.xpose.msra.mxu0 0.0
    %272 = vmatprep.subr.mxu0 0.0
    %273 = vmatpush1.xpose.msra.mxu0 0.0
    %274 = vmatprep.subr.mxu0 0.0
    %275 = vmatpush1.xpose.msra.mxu0 0.0
    %276 = vmatprep.subr.mxu0 0.0
    %277 = vmatpush1.xpose.msra.mxu0 0.0
    %278 = vmatprep.subr.mxu0 0.0
    %279 = vmatpush1.xpose.msra.mxu0 0.0
    %280 = vmatprep.subr.mxu0 0.0
    %281 = vmatpush1.xpose.msra.mxu0 0.0
    %282 = vmatprep.subr.mxu0 0.0
    %283 = vmatpush1.xpose.msra.mxu0 0.0
    %284 = vmatprep.subr.mxu0 0.0
    %285 = vmatpush1.xpose.msra.mxu0 0.0
    %286 = vmatprep.subr.mxu0 0.0
    %287 = vmatpush1.xpose.msra.mxu0 0.0
    %288 = vmatprep.subr.mxu0 0.0
    %289 = vmatpush1.xpose.msra.mxu0 0.0
    %290 = vmatprep.subr.mxu0 0.0
    %291 = vmatpush1.xpose.msra.mxu0 0.0
    %292 = vmatprep.subr.mxu0 0.0
    %293 = vmatpush1.xpose.msra.mxu0 0.0
    %294 = vmatprep.subr.mxu0 0.0
    %295 = vmatpush1.xpose.msra.mxu0 0.0
    %296 = vmatprep.subr.mxu0 0.0
    %297 = vmatpush1.xpose.msra.mxu0 0.0
    %298 = vmatprep.subr.mxu0 0.0
    %299 = vmatpush1.xpose.msra.mxu0 0.0
    %300 = vmatprep.subr.mxu0 0.0
    %301 = vmatpush1.xpose.msra.mxu0 0.0
    %302 = vmatprep.subr.mxu0 0.0
    %303 = vmatpush1.xpose.msra.mxu0 0.0
    %304 = vmatprep.subr.mxu0 0.0
    %305 = vmatpush1.xpose.msra.mxu0 0.0
    %306 = vmatprep.subr.mxu0 0.0
    %307 = vmatpush1.xpose.msra.mxu0 0.0
    %308 = vmatprep.subr.mxu0 0.0
    %309 = vmatpush1.xpose.msra.mxu0 0.0
    %310 = vmatprep.subr.mxu0 0.0
    %311 = vmatpush1.xpose.msra.mxu0 0.0
    %312 = vmatprep.subr.mxu0 0.0
    %313 = vmatpush1.xpose.msra.mxu0 0.0
    %314 = vmatprep.mubr.f32.mxu0 0.0
    %315 = vmatmul.mubr.f32.gmra.mrb[0].mxu0 %v242
    %v316 = vpop.f32.mrb[0].mxu0
    %v317 = vadd.f32 %v248, %v316
    %v318 = vpop.f32.mrb[0].mxu0
    %319 = vdwg.mxu0
    %vm320 = vcmask 64512
    %v321 = vsel %vm320, %v317, -inf
    %322 = vmax.xlane.f32.xlu0 %v321
    %v323 = vpop.xlane.xlu0 %322
    %v324 = vsub.f32 %v317, %v323
    %v325 = vmul.f32 %v324, 1.442695
    %v326 = vpow.pop %v325
    %v327 = vsel %vm320, %v326, 0.0
    %328 = vadd.xlane.f32.xlu0 %v327
    %v329 = vpop.xlane.xlu0 %328
    %v331 = vsel %vm320, %v326, 0
    %333 = vmatprep.subr.mxu0 0.0
    %334 = vmatpush1.msra.mxu0 %v239
    %335 = vmatprep.subr.mxu0 0.0
    %336 = vmatpush1.msra.mxu0 0.0
    %337 = vmatprep.subr.mxu0 0.0
    %338 = vmatpush1.msra.mxu0 0.0
    %339 = vmatprep.subr.mxu0 0.0
    %340 = vmatpush1.msra.mxu0 0.0
    %341 = vmatprep.subr.mxu0 0.0
    %342 = vmatpush1.msra.mxu0 0.0
    %343 = vmatprep.subr.mxu0 0.0
    %344 = vmatpush1.msra.mxu0 0.0
    %345 = vmatprep.subr.mxu0 0.0
    %346 = vmatpush1.msra.mxu0 0.0
    %347 = vmatprep.subr.mxu0 0.0
    %348 = vmatpush1.msra.mxu0 0.0
    %349 = vmatprep.subr.mxu0 0.0
    %350 = vmatpush1.msra.mxu0 0.0
    %351 = vmatprep.subr.mxu0 0.0
    %352 = vmatpush1.msra.mxu0 0.0
    %353 = vmatprep.subr.mxu0 0.0
    %354 = vmatpush1.msra.mxu0 0.0
    %355 = vmatprep.subr.mxu0 0.0
    %356 = vmatpush1.msra.mxu0 0.0
    %357 = vmatprep.subr.mxu0 0.0
    %358 = vmatpush1.msra.mxu0 0.0
    %359 = vmatprep.subr.mxu0 0.0
    %360 = vmatpush1.msra.mxu0 0.0
    %361 = vmatprep.subr.mxu0 0.0
    %362 = vmatpush1.msra.mxu0 0.0
    %363 = vmatprep.subr.mxu0 0.0
    %364 = vmatpush1.msra.mxu0 0.0
    %365 = vmatprep.subr.mxu0 0.0
    %366 = vmatpush1.msra.mxu0 0.0
    %367 = vmatprep.subr.mxu0 0.0
    %368 = vmatpush1.msra.mxu0 0.0
    %369 = vmatprep.subr.mxu0 0.0
    %370 = vmatpush1.msra.mxu0 0.0
    %371 = vmatprep.subr.mxu0 0.0
    %372 = vmatpush1.msra.mxu0 0.0
    %373 = vmatprep.subr.mxu0 0.0
    %374 = vmatpush1.msra.mxu0 0.0
    %375 = vmatprep.subr.mxu0 0.0
    %376 = vmatpush1.msra.mxu0 0.0
    %377 = vmatprep.subr.mxu0 0.0
    %378 = vmatpush1.msra.mxu0 0.0
    %379 = vmatprep.subr.mxu0 0.0
    %380 = vmatpush1.msra.mxu0 0.0
    %381 = vmatprep.subr.mxu0 0.0
    %382 = vmatpush1.msra.mxu0 0.0
    %383 = vmatprep.subr.mxu0 0.0
    %384 = vmatpush1.msra.mxu0 0.0
    %385 = vmatprep.subr.mxu0 0.0
    %386 = vmatpush1.msra.mxu0 0.0
    %387 = vmatprep.subr.mxu0 0.0
    %388 = vmatpush1.msra.mxu0 0.0
    %389 = vmatprep.subr.mxu0 0.0
    %390 = vmatpush1.msra.mxu0 0.0
    %391 = vmatprep.subr.mxu0 0.0
    %392 = vmatpush1.msra.mxu0 0.0
    %393 = vmatprep.subr.mxu0 0.0
    %394 = vmatpush1.msra.mxu0 0.0
    %395 = vmatprep.subr.mxu0 0.0
    %396 = vmatpush1.msra.mxu0 0.0
    %397 = vmatprep.mubr.f32.mxu0 0.0
    %398 = vmatmul.mubr.f32.gmra.mrb[0].mxu0 %v331
    %v399 = vpop.f32.mrb[0].mxu0
    %v400 = vadd.f32 0.0, %v399
    %v401 = vpop.f32.mrb[0].mxu0
    %402 = vdwg.mxu0
    %v403 = vrcp.pop %v329
    %v404 = vmul.f32 %v400, %v403
    %405 = vst [vmem:[#allocation8] sm:$0xff] %v404
    // Predicated region
    $region26: #{tpu_custom_call.1} parent=1 // pred_check
      _
    $region27: #{tpu_custom_call.1} parent=1 // pred_check_branch
      %407 = sbr.rel (0) target = $region29
    $region28: #{tpu_custom_call.1} parent=1 // pred_region
      %s409 = ssub.s32 128, 128
      %410 = vsyncadd [#allocation4], %s409
      %s412 = sshll.u32 [#allocation8], 4
      %s413 = int_to_ptr.vmem [resolvable:$true] %s412
      %415 = dma.vmem_to_hbm [thread:$0]  %s413, 128, %s3, [#allocation4]
    $region29: #{tpu_custom_call.1} parent=1 // pred_fallthru
      _
    // Predicated region
    $region30: #{tpu_custom_call.1} parent=1 // pred_check
      _
    $region31: #{tpu_custom_call.1} parent=1 // pred_check_branch
      %417 = sbr.rel (0) target = $region33
    $region32: #{tpu_custom_call.1} parent=1 // pred_region
      %418 = dma.done [#allocation4], 128
    $region33: #{tpu_custom_call.1} parent=1 // pred_fallthru
      _
    %419 = vsyncpa [#allocation3], 1
    %420 = vsyncpa [#allocation6], 1
    %421 = vsyncpa [#allocation4], 1

</llo_original>
